<compile_context>
chip_gen: v6e
topology: v6e:2x2x1
jax: 0.10.0
libtpu: 0.0.40
codegen_flags: <defaults>
</compile_context>

<pallas_src>
import functools
import math

import numpy as np
import jax
import jax.numpy as jnp
from jax import lax
from jax.experimental import pallas as pl
from jax.experimental.pallas import tpu as pltpu


def _round_up(x: int, m: int) -> int:
    return ((x + m - 1) // m) * m


def _cdiv(a: int, b: int) -> int:
    return (a + b - 1) // b


# ---------------------------------------------------------------------------
# Filterbank construction (plain JAX; matches the PyTorch forward exactly).
# ---------------------------------------------------------------------------
def build_sinc_filters(filt_b1, filt_band, *, N_filt, Filt_dim, fs, freq_scale):
    """Returns the (N_filt, Filt_dim) float32 band-pass filterbank."""
    del N_filt  # implied by parameter shapes
    N = Filt_dim
    min_freq = 50.0
    min_band = 50.0
    filt_beg = jnp.abs(filt_b1) + min_freq / freq_scale                 # (N_filt,)
    filt_end = filt_beg + (jnp.abs(filt_band) + min_band / freq_scale)  # (N_filt,)

    T = int((N - 1) / 2)
    t_right = np.linspace(1.0, (N - 1) / 2.0, T) / fs
    # symmetric time axis [flip(t_right), 0, t_right]; 0 at the center tap
    t_full = jnp.asarray(
        np.concatenate([t_right[::-1], np.zeros(1), t_right]), dtype=jnp.float32
    )                                                                   # (N,)
    n = np.linspace(0.0, N, N)
    window = jnp.asarray(0.54 - 0.46 * np.cos(2.0 * math.pi * n / N),
                         dtype=jnp.float32)                             # (N,)

    def low_pass(f):                                                    # f: (N_filt,)
        band = f[:, None].astype(jnp.float32) * freq_scale              # (N_filt, 1)
        arg = 2.0 * math.pi * band * t_full[None, :]                    # (N_filt, N)
        safe = jnp.where(t_full[None, :] == 0.0, 1.0, arg)
        s = jnp.where(t_full[None, :] == 0.0, 1.0, jnp.sin(safe) / safe)
        return 2.0 * f[:, None].astype(jnp.float32) * s

    band_pass = low_pass(filt_end) - low_pass(filt_beg)                 # (N_filt, N)
    band_pass = band_pass / jnp.max(band_pass, axis=1, keepdims=True)
    return (band_pass * window[None, :]).astype(jnp.float32)


# ---------------------------------------------------------------------------
# Banded (Toeplitz) weight matrix: the conv's shift structure lives here, so
# the kernel never does sub-128 lane shifts on the data side.
#   W[r, f*128 + i] = filters[f, r - i]  if 0 <= r - i < K else 0
#   =>  out[f, s + i] = sum_r x[s + r] * W[r, f*128 + i]   (s = frame start)
# ---------------------------------------------------------------------------
def build_banded_weights(filters, frame_w, dtype):
    n_filt, k = filters.shape
    r = np.arange(frame_w)[:, None]                    # (frame_w, 1)
    i = np.arange(128)[None, :]                        # (1, 128)
    tap = r - i                                        # (frame_w, 128)
    valid = (tap >= 0) & (tap < k)
    tap = np.clip(tap, 0, k - 1)
    w = filters.astype(jnp.float32)[:, tap]            # (N_filt, frame_w, 128)
    w = jnp.where(jnp.asarray(valid)[None], w, 0.0)
    return jnp.transpose(w, (1, 0, 2)).reshape(frame_w, n_filt * 128).astype(dtype)


# ---------------------------------------------------------------------------
# Pallas kernel: one (N_filt, F, 128) output tile per grid step.
# ---------------------------------------------------------------------------
def _sinc_conv_kernel(xa_ref, xb_ref, w_ref, o_ref, *, halo_frames):
    # xa_ref : (1, F, 128)   F lane-aligned input frames of this output tile
    # xb_ref : (1, HB, 128)  halo frames right after the tile (HB >= halo_frames)
    # w_ref  : (128*(1+h), N_filt*128)  banded weights, VMEM-resident (const idx)
    # o_ref  : (1, N_filt, F, 128)      frame-major output tile
    f_tile = xa_ref.shape[1]
    n_filt = o_ref.shape[1]

    x_all = jnp.concatenate([xa_ref[0], xb_ref[0, :halo_frames, :]],
                            axis=0)                                # (F + h, 128)
    # Frames matrix: row j = x[j*128 : j*128 + 128*(1+h)], built from
    # sublane-offset slices only (no sub-128 lane shifts anywhere).
    frames = jnp.concatenate(
        [x_all[p:p + f_tile, :] for p in range(halo_frames + 1)],
        axis=1)                                                    # (F, 128*(1+h))

    # Single MXU matmul; f32 accumulation; result feeds the output directly.
    res = jnp.dot(frames, w_ref[...],
                  preferred_element_type=jnp.float32)              # (F, N_filt*128)

    # Per-filter aligned lane-slice -> aligned sublane store (F multiple of 8).
    for f in range(n_filt):
        o_ref[0, f] = res[:, f * 128:(f + 1) * 128].astype(o_ref.dtype)


def sinc_conv_forward(x_bl, filters, *, tile_frames=16, compute_dtype=jnp.float32):
    """Valid 1-D correlation: (B, L) x (N_filt, K) -> (B, N_filt, L - K + 1) f32."""
    b, l = x_bl.shape
    n_filt, k = filters.shape
    l_out = l - k + 1
    assert l_out >= 1, "input shorter than filter"

    itemsize = jnp.dtype(compute_dtype).itemsize
    sub = 16 if itemsize < 4 else 8               # min sublane multiple (f32/bf16)
    h = max(1, _cdiv(k - 1, 128))                 # halo frames needed on the right
    halo_block = _round_up(h, sub)                # halo DMA block (sublane aligned)
    frames_out = _cdiv(l_out, 128)

    # frames per tile: default 16 (TILE_L = 2048); multiple of sub and halo_block
    f_tile = _round_up(min(max(tile_frames, sub), _round_up(frames_out, sub)),
                       halo_block)
    num_tiles = _cdiv(frames_out, f_tile)
    tf_out = num_tiles * f_tile
    tf_in = (num_tiles + 1) * f_tile              # extra tile so last halo is in range
    frame_w = 128 * (1 + h)

    x_p = jnp.zeros((b, tf_in * 128), compute_dtype).at[:, :l].set(
        x_bl.astype(compute_dtype))
    x_frames = x_p.reshape(b, tf_in, 128)         # contiguous reshape (bitcast)
    w_band = build_banded_weights(filters, frame_w, compute_dtype)

    kernel = functools.partial(_sinc_conv_kernel, halo_frames=h)
    hb = halo_block
    fpb = f_tile // halo_block                    # tile size in halo-block units

    out = pl.pallas_call(
        kernel,
        out_shape=jax.ShapeDtypeStruct((b, n_filt, tf_out, 128), jnp.float32),
        grid=(b, num_tiles),
        in_specs=[
            # F frames of this tile
            pl.BlockSpec((1, f_tile, 128), lambda bi, j: (bi, j, 0)),
            # narrow lane-aligned halo right after the tile (same array)
            pl.BlockSpec((1, hb, 128), lambda bi, j: (bi, (j + 1) * fpb, 0)),
            # banded filterbank resident in VMEM across the whole grid
            pl.BlockSpec((frame_w, n_filt * 128), lambda bi, j: (0, 0)),
        ],
        out_specs=pl.BlockSpec((1, n_filt, f_tile, 128),
                               lambda bi, j: (bi, 0, j, 0)),
        compiler_params=pltpu.CompilerParams(
            dimension_semantics=("parallel", "parallel")),
        cost_estimate=pl.CostEstimate(
            flops=int(2 * b * num_tiles * f_tile * frame_w * n_filt * 128),
            transcendentals=0,
            bytes_accessed=int((x_frames.size + w_band.size) * itemsize
                               + b * n_filt * tf_out * 128 * 4)),
    )(x_frames, x_frames, w_band)

    # frame-major (B, N_filt, frames, 128) -> (B, N_filt, L_out_pad): free bitcast
    out = out.reshape(b, n_filt, tf_out * 128)
    if tf_out * 128 != l_out:
        # TODO(synk): consumers that tolerate the padded length should skip this
        # slice (it is one extra HBM pass over the dominant output tensor).
        out = out[:, :, :l_out]
    return out


# ---------------------------------------------------------------------------
# Module-equivalent wrapper (parameter init mirrors sinc_conv.__init__)
# ---------------------------------------------------------------------------
class SincConv:
    def __init__(self, N_filt, Filt_dim, fs):
        low_freq_mel = 80.0
        high_freq_mel = 2595.0 * np.log10(1.0 + fs / 2.0 / 700.0)
        mel_points = np.linspace(low_freq_mel, high_freq_mel, N_filt)
        f_cos = 700.0 * (10.0 ** (mel_points / 2595.0) - 1.0)
        b1 = np.roll(f_cos, 1)
        b2 = np.roll(f_cos, -1)
        b1[0] = 30.0
        b2[-1] = fs / 2.0 - 100.0
        self.freq_scale = fs * 1.0
        self.filt_b1 = jnp.asarray(b1 / self.freq_scale, dtype=jnp.float32)
        self.filt_band = jnp.asarray((b2 - b1) / self.freq_scale, dtype=jnp.float32)
        self.N_filt = N_filt
        self.Filt_dim = Filt_dim
        self.fs = fs

    def __call__(self, x, *, compute_dtype=jnp.float32, tile_frames=16):
        # x: (B, 1, L)  (PyTorch NCL, single input channel)
        filters = build_sinc_filters(
            self.filt_b1, self.filt_band, N_filt=self.N_filt,
            Filt_dim=self.Filt_dim, fs=self.fs, freq_scale=self.freq_scale)
        x_bl = x[:, 0, :].astype(jnp.float32)                     # (B, L)
        return sinc_conv_forward(x_bl, filters, tile_frames=tile_frames,
                                 compute_dtype=compute_dtype)     # (B, N_filt, L_out)


if __name__ == "__main__":
    def numpy_reference_filters(model):
        """Independent float64 NumPy re-derivation of the filterbank."""
        N, fs, fsc = model.Filt_dim, model.fs, model.freq_scale
        T = int((N - 1) / 2)
        t_right = np.linspace(1.0, (N - 1) / 2.0, T) / fs
        t_full = np.concatenate([t_right[::-1], np.zeros(1), t_right])[None, :]
        n = np.linspace(0.0, N, N)
        window = 0.54 - 0.46 * np.cos(2.0 * math.pi * n / N)
        beg = np.abs(np.asarray(model.filt_b1, dtype=np.float64)) + 50.0 / fsc
        end = beg + (np.abs(np.asarray(model.filt_band, dtype=np.float64)) + 50.0 / fsc)

        def lp(f):
            arg = 2.0 * math.pi * (f[:, None] * fsc) * t_full
            with np.errstate(divide="ignore", invalid="ignore"):
                s = np.where(t_full == 0.0, 1.0, np.sin(arg) / arg)
            return 2.0 * f[:, None] * s

        bp = lp(end) - lp(beg)
        bp = bp / np.max(bp, axis=1, keepdims=True)
        return bp * window[None, :]

    def check(model, x, *, compute_dtype, conv_rtol, conv_atol):
        filters = build_sinc_filters(
            model.filt_b1, model.filt_band, N_filt=model.N_filt,
            Filt_dim=model.Filt_dim, fs=model.fs, freq_scale=model.freq_scale)
        # filterbank vs. independent float64 reference (f32 trig with large
        # 2*pi*f*t arguments + 1/max normalization => loose-ish tolerance)
        np.testing.assert_allclose(np.asarray(filters),
                                   numpy_reference_filters(model),
                                   rtol=2e-3, atol=2e-3)
        out = jax.block_until_ready(model(x, compute_dtype=compute_dtype))
        l_out = x.shape[-1] - model.Filt_dim + 1
        assert out.shape == (x.shape[0], model.N_filt, l_out), out.shape
        ref = lax.conv_general_dilated(
            x.astype(jnp.float32), filters[:, None, :],
            window_strides=(1,), padding="VALID",
            dimension_numbers=("NCH", "OIH", "NCH"),
            precision=lax.Precision.HIGHEST)
        np.testing.assert_allclose(np.asarray(out), np.asarray(ref),
                                   rtol=conv_rtol, atol=conv_atol)
        return out

    # primary small demo (matches module interface): B=2, C=1, L=80,
    # N_filt=8, Filt_dim=17 -> single grid step
    key = jax.random.PRNGKey(0)
    model = SincConv(N_filt=8, Filt_dim=17, fs=16000)
    x = jax.random.normal(key, (2, 1, 80), dtype=jnp.float32)
    check(model, x, compute_dtype=jnp.float32, conv_rtol=1e-4, conv_atol=1e-5)

    # multi-tile path: L_out = 3936 -> 2 tiles of 2048, halo crossing tile edge
    model2 = SincConv(N_filt=20, Filt_dim=65, fs=16000)
    x2 = jax.random.normal(jax.random.PRNGKey(1), (2, 1, 4000), dtype=jnp.float32)
    check(model2, x2, compute_dtype=jnp.float32, conv_rtol=1e-4, conv_atol=1e-4)

    # K > 129 -> two halo frames (h = 2), banded weight with frame width 384
    model3 = SincConv(N_filt=6, Filt_dim=131, fs=16000)
    x3 = jax.random.normal(jax.random.PRNGKey(2), (2, 1, 1000), dtype=jnp.float32)
    check(model3, x3, compute_dtype=jnp.float32, conv_rtol=1e-4, conv_atol=1e-4)

    # bf16 MXU operands (v6e/v7x perf path): f32 accumulation, looser tolerance
    check(model, x, compute_dtype=jnp.bfloat16, conv_rtol=1e-1, conv_atol=1e-1)

    print("KERNEL_OK")
</pallas_src>

<mosaic_0001>
module attributes {stable_mosaic.version = 11 : i64} {
  func.func @_sinc_conv_kernel(%arg0: i32, %arg1: i32, %arg2: memref<1x8x128xf32, #tpu.memory_space<vmem>>, %arg3: memref<1x8x128xf32, #tpu.memory_space<vmem>>, %arg4: memref<256x1024xf32, #tpu.memory_space<vmem>>, %arg5: memref<1x8x8x128xf32, #tpu.memory_space<vmem>>) attributes {dimension_semantics = [#tpu.dimension_semantics<parallel>, #tpu.dimension_semantics<parallel>], iteration_bounds = array<i64: 2, 1>, scalar_prefetch = 0 : i64, scratch_operands = 0 : i64, tpu.core_type = #tpu.core_type<tc>, window_params = [{transform_indices = @transform_0, window_bounds = array<i64: 1, 8, 128>}, {transform_indices = @transform_1, window_bounds = array<i64: 1, 8, 128>}, {pipeline_mode = #tpu.pipeline_mode<synchronous>, transform_indices = @transform_2, window_bounds = array<i64: 256, 1024>}, {transform_indices = @transform_3, window_bounds = array<i64: 1, 8, 8, 128>}]} {
    %c0 = arith.constant 0 : index
    %c0_0 = arith.constant 0 : index
    %c0_1 = arith.constant 0 : index
    %0 = vector.load %arg2[%c0, %c0_0, %c0_1] : memref<1x8x128xf32, #tpu.memory_space<vmem>>, vector<1x8x128xf32>
    %1 = vector.shape_cast %0 : vector<1x8x128xf32> to vector<8x128xf32>
    %c0_2 = arith.constant 0 : index
    %c0_3 = arith.constant 0 : index
    %c0_4 = arith.constant 0 : index
    %2 = vector.load %arg3[%c0_2, %c0_3, %c0_4] : memref<1x8x128xf32, #tpu.memory_space<vmem>>, vector<1x1x128xf32>
    %3 = vector.shape_cast %2 : vector<1x1x128xf32> to vector<1x128xf32>
    %4 = tpu.concatenate %1, %3 in 0 : vector<8x128xf32>, vector<1x128xf32> -> vector<9x128xf32>
    %5 = vector.extract_strided_slice %4 {offsets = [0, 0], sizes = [8, 128], strides = [1, 1]} : vector<9x128xf32> to vector<8x128xf32>
    %6 = vector.extract_strided_slice %4 {offsets = [1, 0], sizes = [8, 128], strides = [1, 1]} : vector<9x128xf32> to vector<8x128xf32>
    %7 = tpu.concatenate %5, %6 in 1 : vector<8x128xf32>, vector<8x128xf32> -> vector<8x256xf32>
    %c0_5 = arith.constant 0 : index
    %c0_6 = arith.constant 0 : index
    %8 = vector.load %arg4[%c0_5, %c0_6] : memref<256x1024xf32, #tpu.memory_space<vmem>>, vector<256x1024xf32>
    %cst = arith.constant dense<0.000000e+00> : vector<8x1024xf32>
    %9 = tpu.matmul %7, %8, %cst {dimension_numbers = #tpu.dot_dimension_numbers<[1], [0], [0], [1], [0, 0, 1, 1], [], []>} : vector<8x256xf32>, vector<256x1024xf32>, vector<8x1024xf32> -> vector<8x1024xf32>
    %10 = vector.extract_strided_slice %9 {offsets = [0, 0], sizes = [8, 128], strides = [1, 1]} : vector<8x1024xf32> to vector<8x128xf32>
    %c0_7 = arith.constant 0 : index
    %c0_8 = arith.constant 0 : index
    %c0_9 = arith.constant 0 : index
    %c0_10 = arith.constant 0 : index
    %11 = vector.load %arg5[%c0_7, %c0_8, %c0_9, %c0_10] : memref<1x8x8x128xf32, #tpu.memory_space<vmem>>, vector<1x1x8x128xf32>
    %12 = vector.shape_cast %11 : vector<1x1x8x128xf32> to vector<8x128xf32>
    %13 = vector.shape_cast %10 : vector<8x128xf32> to vector<1x1x8x128xf32>
    tpu.vector_store %arg5[%c0_7, %c0_8, %c0_9, %c0_10], %13 {strides = array<i32>} : memref<1x8x8x128xf32, #tpu.memory_space<vmem>>, vector<1x1x8x128xf32>,
    %14 = vector.extract_strided_slice %9 {offsets = [0, 128], sizes = [8, 128], strides = [1, 1]} : vector<8x1024xf32> to vector<8x128xf32>
    %c0_11 = arith.constant 0 : index
    %c1 = arith.constant 1 : index
    %c0_12 = arith.constant 0 : index
    %c0_13 = arith.constant 0 : index
    %15 = vector.load %arg5[%c0_11, %c1, %c0_12, %c0_13] : memref<1x8x8x128xf32, #tpu.memory_space<vmem>>, vector<1x1x8x128xf32>
    %16 = vector.shape_cast %15 : vector<1x1x8x128xf32> to vector<8x128xf32>
    %17 = vector.shape_cast %14 : vector<8x128xf32> to vector<1x1x8x128xf32>
    tpu.vector_store %arg5[%c0_11, %c1, %c0_12, %c0_13], %17 {strides = array<i32>} : memref<1x8x8x128xf32, #tpu.memory_space<vmem>>, vector<1x1x8x128xf32>,
    %18 = vector.extract_strided_slice %9 {offsets = [0, 256], sizes = [8, 128], strides = [1, 1]} : vector<8x1024xf32> to vector<8x128xf32>
    %c0_14 = arith.constant 0 : index
    %c2 = arith.constant 2 : index
    %c0_15 = arith.constant 0 : index
    %c0_16 = arith.constant 0 : index
    %19 = vector.load %arg5[%c0_14, %c2, %c0_15, %c0_16] : memref<1x8x8x128xf32, #tpu.memory_space<vmem>>, vector<1x1x8x128xf32>
    %20 = vector.shape_cast %19 : vector<1x1x8x128xf32> to vector<8x128xf32>
    %21 = vector.shape_cast %18 : vector<8x128xf32> to vector<1x1x8x128xf32>
    tpu.vector_store %arg5[%c0_14, %c2, %c0_15, %c0_16], %21 {strides = array<i32>} : memref<1x8x8x128xf32, #tpu.memory_space<vmem>>, vector<1x1x8x128xf32>,
    %22 = vector.extract_strided_slice %9 {offsets = [0, 384], sizes = [8, 128], strides = [1, 1]} : vector<8x1024xf32> to vector<8x128xf32>
    %c0_17 = arith.constant 0 : index
    %c3 = arith.constant 3 : index
    %c0_18 = arith.constant 0 : index
    %c0_19 = arith.constant 0 : index
    %23 = vector.load %arg5[%c0_17, %c3, %c0_18, %c0_19] : memref<1x8x8x128xf32, #tpu.memory_space<vmem>>, vector<1x1x8x128xf32>
    %24 = vector.shape_cast %23 : vector<1x1x8x128xf32> to vector<8x128xf32>
    %25 = vector.shape_cast %22 : vector<8x128xf32> to vector<1x1x8x128xf32>
    tpu.vector_store %arg5[%c0_17, %c3, %c0_18, %c0_19], %25 {strides = array<i32>} : memref<1x8x8x128xf32, #tpu.memory_space<vmem>>, vector<1x1x8x128xf32>,
    %26 = vector.extract_strided_slice %9 {offsets = [0, 512], sizes = [8, 128], strides = [1, 1]} : vector<8x1024xf32> to vector<8x128xf32>
    %c0_20 = arith.constant 0 : index
    %c4 = arith.constant 4 : index
    %c0_21 = arith.constant 0 : index
    %c0_22 = arith.constant 0 : index
    %27 = vector.load %arg5[%c0_20, %c4, %c0_21, %c0_22] : memref<1x8x8x128xf32, #tpu.memory_space<vmem>>, vector<1x1x8x128xf32>
    %28 = vector.shape_cast %27 : vector<1x1x8x128xf32> to vector<8x128xf32>
    %29 = vector.shape_cast %26 : vector<8x128xf32> to vector<1x1x8x128xf32>
    tpu.vector_store %arg5[%c0_20, %c4, %c0_21, %c0_22], %29 {strides = array<i32>} : memref<1x8x8x128xf32, #tpu.memory_space<vmem>>, vector<1x1x8x128xf32>,
    %30 = vector.extract_strided_slice %9 {offsets = [0, 640], sizes = [8, 128], strides = [1, 1]} : vector<8x1024xf32> to vector<8x128xf32>
    %c0_23 = arith.constant 0 : index
    %c5 = arith.constant 5 : index
    %c0_24 = arith.constant 0 : index
    %c0_25 = arith.constant 0 : index
    %31 = vector.load %arg5[%c0_23, %c5, %c0_24, %c0_25] : memref<1x8x8x128xf32, #tpu.memory_space<vmem>>, vector<1x1x8x128xf32>
    %32 = vector.shape_cast %31 : vector<1x1x8x128xf32> to vector<8x128xf32>
    %33 = vector.shape_cast %30 : vector<8x128xf32> to vector<1x1x8x128xf32>
    tpu.vector_store %arg5[%c0_23, %c5, %c0_24, %c0_25], %33 {strides = array<i32>} : memref<1x8x8x128xf32, #tpu.memory_space<vmem>>, vector<1x1x8x128xf32>,
    %34 = vector.extract_strided_slice %9 {offsets = [0, 768], sizes = [8, 128], strides = [1, 1]} : vector<8x1024xf32> to vector<8x128xf32>
    %c0_26 = arith.constant 0 : index
    %c6 = arith.constant 6 : index
    %c0_27 = arith.constant 0 : index
    %c0_28 = arith.constant 0 : index
    %35 = vector.load %arg5[%c0_26, %c6, %c0_27, %c0_28] : memref<1x8x8x128xf32, #tpu.memory_space<vmem>>, vector<1x1x8x128xf32>
    %36 = vector.shape_cast %35 : vector<1x1x8x128xf32> to vector<8x128xf32>
    %37 = vector.shape_cast %34 : vector<8x128xf32> to vector<1x1x8x128xf32>
    tpu.vector_store %arg5[%c0_26, %c6, %c0_27, %c0_28], %37 {strides = array<i32>} : memref<1x8x8x128xf32, #tpu.memory_space<vmem>>, vector<1x1x8x128xf32>,
    %38 = vector.extract_strided_slice %9 {offsets = [0, 896], sizes = [8, 128], strides = [1, 1]} : vector<8x1024xf32> to vector<8x128xf32>
    %c0_29 = arith.constant 0 : index
    %c7 = arith.constant 7 : index
    %c0_30 = arith.constant 0 : index
    %c0_31 = arith.constant 0 : index
    %39 = vector.load %arg5[%c0_29, %c7, %c0_30, %c0_31] : memref<1x8x8x128xf32, #tpu.memory_space<vmem>>, vector<1x1x8x128xf32>
    %40 = vector.shape_cast %39 : vector<1x1x8x128xf32> to vector<8x128xf32>
    %41 = vector.shape_cast %38 : vector<8x128xf32> to vector<1x1x8x128xf32>
    tpu.vector_store %arg5[%c0_29, %c7, %c0_30, %c0_31], %41 {strides = array<i32>} : memref<1x8x8x128xf32, #tpu.memory_space<vmem>>, vector<1x1x8x128xf32>,
    return
  }
  func.func @transform_0(%arg0: i32, %arg1: i32) -> (i32, i32, i32) {
    %c0_i32 = arith.constant 0 : i32
    %c0_i32_0 = arith.constant 0 : i32
    return %arg0, %arg1, %c0_i32 : i32, i32, i32
  }
  func.func @transform_1(%arg0: i32, %arg1: i32) -> (i32, i32, i32) {
    %c1_i32 = arith.constant 1 : i32
    %0 = arith.addi %arg1, %c1_i32 : i32
    %c1_i32_0 = arith.constant 1 : i32
    %1 = arith.muli %0, %c1_i32_0 : i32
    %c0_i32 = arith.constant 0 : i32
    %c0_i32_1 = arith.constant 0 : i32
    return %arg0, %1, %c0_i32 : i32, i32, i32
  }
  func.func @transform_2(%arg0: i32, %arg1: i32) -> (i32, i32) {
    %c0_i32 = arith.constant 0 : i32
    %c0_i32_0 = arith.constant 0 : i32
    %c0_i32_1 = arith.constant 0 : i32
    return %c0_i32, %c0_i32_0 : i32, i32
  }
  func.func @transform_3(%arg0: i32, %arg1: i32) -> (i32, i32, i32, i32) {
    %c0_i32 = arith.constant 0 : i32
    %c0_i32_0 = arith.constant 0 : i32
    %c0_i32_1 = arith.constant 0 : i32
    return %arg0, %c0_i32, %arg1, %c0_i32_0 : i32, i32, i32, i32
  }
}

</mosaic_0001>

<llo_original>
// kernel: tpu_custom_call.1
$region0: #{tpu_custom_call.1}
  #allocation0 [shape = 'u32[]', space=smem, size = 0x4, offset = 0x4, fixed_abs, tag = 'smem constant byte address 0x4 - core index']
  #allocation1 [shape = 'u32[144,128]{1,0:T(1,128)}', space=vmem, size = 0x12000, scoped, tag = 'internal scratch']
  %s0 = inlined_call_operand.hbm [shape: f32[2,16,128], index: 0, kind: input, shape index: {}]
  %s1 = inlined_call_operand.hbm [shape: f32[2,16,128], index: 1, kind: input, shape index: {}]
  %s2 = inlined_call_operand.hbm [shape: f32[256,1024], index: 2, kind: input, shape index: {}]
  %s3 = inlined_call_operand.hbm [shape: f32[2,8,8,128], index: 3, kind: output, shape index: {}]
  %s4 = sld [smem:[#allocation0]]
  $region57: #{tpu_custom_call.1} parent=0
    _
  %s6 = ssub.s32 1, %s4
  %s7 = scalar_select 0, %s6, %s4
  $region1: #{tpu_custom_call.1} parent=0
    #allocation2 [shape = 'u8[8192]{0}', space=vmem, size = 0x2000, scoped, tag = 'input window, operand 0']
    #allocation3 [shape = 's32[2]{0}', space=sflag, size = 0x8, scoped, tag = 'scoped memory for tpu_custom_call.1']
    #allocation4 [shape = 's32[2]{0}', space=sflag, size = 0x8, scoped, tag = 'scoped memory for tpu_custom_call.1']
    #allocation5 [shape = 'u8[8192]{0}', space=vmem, size = 0x2000, scoped, tag = 'input window, operand 1']
    #allocation6 [shape = 's32[2]{0}', space=sflag, size = 0x8, scoped, tag = 'scoped memory for tpu_custom_call.1']
    #allocation7 [shape = 'u8[1048576]{0}', space=vmem, size = 0x100000, scoped, tag = 'input window, operand 2, single buffered']
    #allocation8 [shape = 'u8[65536]{0}', space=vmem, size = 0x10000, scoped, tag = 'output window, operand 0']
    %8 = vsyncpa [#allocation3], 0
    %s9 = scalar_lea.sflag [#allocation3], 1
    %10 = vsyncpa %s9, 0
    %11 = vsyncpa [#allocation6], 0
    %s12 = scalar_lea.sflag [#allocation6], 1
    %13 = vsyncpa %s12, 0
    %14 = vsyncpa [#allocation4], 0
    %s15 = scalar_lea.sflag [#allocation4], 1
    %16 = vsyncpa %s15, 0
    loop: start=0, step=1, limit=4
    $region2: #{tpu_custom_call.1} parent=1 // loop_pre_header
      _
    $region3: #{tpu_custom_call.1} parent=1 // loop_header
      %s18 = sphi 0, %s22
      %p19 = scmp.ge.s32.totalorder %s18, 4
      %s25 = sphi 0, %s37
      %s26 = sphi 0, %s33
      %s27 = sphi 0, %s25
      %s28 = sphi 0, %s26
      %s29 = sphi 0, %s27
      %s30 = sphi 0, %s28
      %s42 = sphi 0, %s44
      %s45 = sphi 0, %s42
      %s46 = sphi 0, %s45
      %s62 = sphi 0, %s46
      %s72 = sphi 0, %s74
      %s75 = sphi 0, %s72
      %s76 = sphi 0, %s75
      %s92 = sphi 0, %s76
      %s96 = sphi 0, %s96
      %s98 = sphi 0, %s96
      %s99 = sphi 0, %s98
      %s113 = sphi 0, %s99
      %s121 = sphi 0, %s123
      %s124 = sphi 0, %s121
      %s125 = sphi 0, %s124
      %s141 = sphi 0, %s125
    $region4: #{tpu_custom_call.1} parent=1 // loop_header_branch
      %21 = sbr.rel (%p19) target = $region8
    $region5: #{tpu_custom_call.1} parent=1 // loop_body
      %s23 = ssub.s32 %s18, 1
      %s24 = ssub.s32 %s18, 2
      %s31 = sadd.s32 1, %s26
      %p32 = scmp.ge.s32.totalorder %s31, 1
      %s33 = scalar_select %p32, 0, %s31
      %s34 = sadd.s32 1, %s25
      %s35 = scalar_select %p32, %s34, %s25
      %p36 = scmp.ge.s32.totalorder %s35, 2
      %s37 = scalar_select %p36, 0, %s35
      %s38 = ssub.s32 %s25, %s37
      %s39 = ssub.s32 %s26, %s33
      %s40 = sor.u32 %s38, %s39
      %p41 = scmp.eq.s32.totalorder %s40, 0
      %s43 = sadd.s32 %s42, 1
      %s44 = scalar_select %p41, %s42, %s43
      %p47 = pneg %p41
      %p48 = scmp.eq.s32.totalorder %s18, 1
      %p49 = por %p47, %p48
      %p50 = scmp.ne.s32.totalorder %s42, %s45
      %p51 = scmp.eq.s32.totalorder %s18, 0
      %p52 = por %p50, %p51
      %p53 = scmp.ne.s32.totalorder %s42, %s45
      %p54 = scmp.eq.s32.totalorder %s23, 1
      %p55 = por %p53, %p54
      %p56 = scmp.ne.s32.totalorder %s45, %s46
      %p57 = scmp.eq.s32.totalorder %s23, 0
      %p58 = por %p56, %p57
      %p59 = scmp.ne.s32.totalorder %s45, %s46
      %p60 = scmp.eq.s32.totalorder %s24, 1
      %p61 = por %p59, %p60
      %p63 = scmp.ne.s32.totalorder %s46, %s62
      %p64 = scmp.eq.s32.totalorder %s24, 0
      %p65 = por %p63, %p64
      %s66 = sadd.s32 %s26, 1
      %s67 = sadd.s32 %s33, 1
      %s68 = ssub.s32 %s25, %s37
      %s69 = ssub.s32 %s66, %s67
      %s70 = sor.u32 %s68, %s69
      %p71 = scmp.eq.s32.totalorder %s70, 0
      %s73 = sadd.s32 %s72, 1
      %s74 = scalar_select %p71, %s72, %s73
      %p77 = pneg %p71
      %p78 = scmp.eq.s32.totalorder %s18, 1
      %p79 = por %p77, %p78
      %p80 = scmp.ne.s32.totalorder %s72, %s75
      %p81 = scmp.eq.s32.totalorder %s18, 0
      %p82 = por %p80, %p81
      %p83 = scmp.ne.s32.totalorder %s72, %s75
      %p84 = scmp.eq.s32.totalorder %s23, 1
      %p85 = por %p83, %p84
      %p86 = scmp.ne.s32.totalorder %s75, %s76
      %p87 = scmp.eq.s32.totalorder %s23, 0
      %p88 = por %p86, %p87
      %p89 = scmp.ne.s32.totalorder %s75, %s76
      %p90 = scmp.eq.s32.totalorder %s24, 1
      %p91 = por %p89, %p90
      %p93 = scmp.ne.s32.totalorder %s76, %s92
      %p94 = scmp.eq.s32.totalorder %s24, 0
      %p95 = por %p93, %p94
      %s97 = sadd.s32 %s96, 1
      %p100 = scmp.eq.s32.totalorder %s18, 1
      %p101 = scmp.ne.s32.totalorder %s96, %s98
      %p102 = scmp.eq.s32.totalorder %s18, 0
      %p103 = por %p101, %p102
      %p104 = scmp.ne.s32.totalorder %s96, %s98
      %p105 = scmp.eq.s32.totalorder %s23, 1
      %p106 = por %p104, %p105
      %p107 = scmp.ne.s32.totalorder %s98, %s99
      %p108 = scmp.eq.s32.totalorder %s23, 0
      %p109 = por %p107, %p108
      %p110 = scmp.ne.s32.totalorder %s98, %s99
      %p111 = scmp.eq.s32.totalorder %s24, 1
      %p112 = por %p110, %p111
      %p114 = scmp.ne.s32.totalorder %s99, %s113
      %p115 = scmp.eq.s32.totalorder %s24, 0
      %p116 = por %p114, %p115
      %s117 = ssub.s32 %s25, %s37
      %s118 = ssub.s32 %s26, %s33
      %s119 = sor.u32 %s117, %s118
      %p120 = scmp.eq.s32.totalorder %s119, 0
      %s122 = sadd.s32 %s121, 1
      %s123 = scalar_select %p120, %s121, %s122
      %p126 = pneg %p120
      %p127 = scmp.eq.s32.totalorder %s18, 1
      %p128 = por %p126, %p127
      %p129 = scmp.ne.s32.totalorder %s121, %s124
      %p130 = scmp.eq.s32.totalorder %s18, 0
      %p131 = por %p129, %p130
      %p132 = scmp.ne.s32.totalorder %s121, %s124
      %p133 = scmp.eq.s32.totalorder %s23, 1
      %p134 = por %p132, %p133
      %p135 = scmp.ne.s32.totalorder %s124, %s125
      %p136 = scmp.eq.s32.totalorder %s23, 0
      %p137 = por %p135, %p136
      %p138 = scmp.ne.s32.totalorder %s124, %s125
      %p139 = scmp.eq.s32.totalorder %s24, 1
      %p140 = por %p138, %p139
      %p142 = scmp.ne.s32.totalorder %s125, %s141
      %p143 = scmp.eq.s32.totalorder %s24, 0
      %p144 = por %p142, %p143
      %p145 = scmp.le.s32.totalorder 1, %s18
      %p146 = scmp.lt.s32.totalorder %s18, 3
      %p147 = pnand %p145, %p146
      %p148 = pneg %p147
      // Predicated region
      $region9: #{tpu_custom_call.1} parent=5 // pred_check
        _
      $region10: #{tpu_custom_call.1} parent=5 // pred_check_branch
        %150 = sbr.rel (%p147) target = $region12
      $region11: #{tpu_custom_call.1} parent=5 // pred_region
        %s151 = ssub.s32 %s18, 1
        // Predicated region
        $region13: #{tpu_custom_call.1} parent=11 // pred_check
          %p152 = pneg %p109
        $region14: #{tpu_custom_call.1} parent=11 // pred_check_branch
          %154 = sbr.rel (%p152) target = $region16
        $region15: #{tpu_custom_call.1} parent=11 // pred_region
          %s156 = ssub.s32 32768, 32768
          %157 = vsyncadd [#allocation6], %s156
          %s158 = sshll.u32 [#allocation7], 4
          %s159 = int_to_ptr.vmem [resolvable:$true] %s158
          %164 = dma.hbm_to_vmem [thread:$0]  %s2, 32768, %s159, [#allocation6], 1024, 1024, 64
        $region16: #{tpu_custom_call.1} parent=11 // pred_fallthru
          _
      $region12: #{tpu_custom_call.1} parent=5 // pred_fallthru
        _
      %p165 = scmp.lt.s32.totalorder %s18, 2
      // Predicated region
      $region17: #{tpu_custom_call.1} parent=5 // pred_check
        %p166 = pneg %p165
      $region18: #{tpu_custom_call.1} parent=5 // pred_check_branch
        %168 = sbr.rel (%p166) target = $region20
      $region19: #{tpu_custom_call.1} parent=5 // pred_region
        // Predicated region
        $region21: #{tpu_custom_call.1} parent=19 // pred_check
          %p169 = pneg %p52
        $region22: #{tpu_custom_call.1} parent=19 // pred_check_branch
          %171 = sbr.rel (%p169) target = $region24
        $region23: #{tpu_custom_call.1} parent=19 // pred_region
          %s172 = sand.u32 %s42, 1
          %s173 = scalar_lea.sflag [#allocation3], %s172
          %s174 = sand.u32 %s42, 1
          %s175 = smul.addr %s174, 8
          %s176 = scalar_lea.vmem [#allocation2], %s175
          %s178 = ssub.s32 128, 128
          %179 = vsyncadd %s173, %s178
          %s180 = smul.addr %s25, 2
          %s181 = sadd.s32 %s26, %s180
          %s182 = smul.addr %s181, 128
          %s183 = scalar_lea.hbm %s0, %s182
          %s185 = sshll.u32 %s176, 4
          %s186 = int_to_ptr.vmem [resolvable:$true] %s185
          %188 = dma.hbm_to_vmem [thread:$0]  %s183, 128, %s186, %s173
        $region24: #{tpu_custom_call.1} parent=19 // pred_fallthru
          _
        // Predicated region
        $region25: #{tpu_custom_call.1} parent=19 // pred_check
          %p189 = pneg %p82
        $region26: #{tpu_custom_call.1} parent=19 // pred_check_branch
          %191 = sbr.rel (%p189) target = $region28
        $region27: #{tpu_custom_call.1} parent=19 // pred_region
          %s192 = sand.u32 %s18, 1
          %s193 = scalar_lea.sflag [#allocation6], %s192
          %s194 = sand.u32 %s72, 1
          %s195 = smul.addr %s194, 8
          %s196 = scalar_lea.vmem [#allocation5], %s195
          %s197 = sadd.s32 %s26, 1
          %s199 = ssub.s32 128, 128
          %200 = vsyncadd %s193, %s199
          %s201 = smul.addr %s25, 2
          %s202 = sadd.s32 %s197, %s201
          %s203 = smul.addr %s202, 128
          %s204 = scalar_lea.hbm %s1, %s203
          %s206 = sshll.u32 %s196, 4
          %s207 = int_to_ptr.vmem [resolvable:$true] %s206
          %209 = dma.hbm_to_vmem [thread:$0]  %s204, 128, %s207, %s193
        $region28: #{tpu_custom_call.1} parent=19 // pred_fallthru
          _
      $region20: #{tpu_custom_call.1} parent=5 // pred_fallthru
        _
      %p210 = scmp.le.s32.totalorder 1, %s18
      %p211 = scmp.lt.s32.totalorder %s18, 3
      %p212 = pnand %p210, %p211
      %p213 = pneg %p212
      // Predicated region
      $region29: #{tpu_custom_call.1} parent=5 // pred_check
        _
      $region30: #{tpu_custom_call.1} parent=5 // pred_check_branch
        %215 = sbr.rel (%p212) target = $region32
      $region31: #{tpu_custom_call.1} parent=5 // pred_region
        %s216 = ssub.s32 %s18, 1
        %s217 = sand.u32 %s45, 1
        %s218 = scalar_lea.sflag [#allocation3], %s217
        %s219 = sand.u32 %s45, 1
        %s220 = smul.addr %s219, 8
        %s221 = scalar_lea.vmem [#allocation2], %s220
        // Predicated region
        $region33: #{tpu_custom_call.1} parent=31 // pred_check
          %p222 = pneg %p58
        $region34: #{tpu_custom_call.1} parent=31 // pred_check_branch
          %224 = sbr.rel (%p222) target = $region36
        $region35: #{tpu_custom_call.1} parent=31 // pred_region
          %225 = dma.done %s218, 128
        $region36: #{tpu_custom_call.1} parent=31 // pred_fallthru
          _
        %s226 = sand.u32 %s23, 1
        %s227 = scalar_lea.sflag [#allocation6], %s226
        %s228 = sand.u32 %s75, 1
        %s229 = smul.addr %s228, 8
        %s230 = scalar_lea.vmem [#allocation5], %s229
        // Predicated region
        $region37: #{tpu_custom_call.1} parent=31 // pred_check
          %p231 = pneg %p88
        $region38: #{tpu_custom_call.1} parent=31 // pred_check_branch
          %233 = sbr.rel (%p231) target = $region40
        $region39: #{tpu_custom_call.1} parent=31 // pred_region
          %234 = dma.done %s227, 128
        $region40: #{tpu_custom_call.1} parent=31 // pred_fallthru
          _
        // Predicated region
        $region41: #{tpu_custom_call.1} parent=31 // pred_check
          %p235 = pneg %p109
        $region42: #{tpu_custom_call.1} parent=31 // pred_check_branch
          %237 = sbr.rel (%p235) target = $region44
        $region43: #{tpu_custom_call.1} parent=31 // pred_region
          %238 = dma.done [#allocation6], 32768
        $region44: #{tpu_custom_call.1} parent=31 // pred_fallthru
          _
        %s239 = sand.u32 %s45, 1
        %s240 = scalar_lea.sflag [#allocation3], %s239
        %s241 = sand.u32 %s45, 1
        %s242 = smul.addr %s241, 8
        %s243 = scalar_lea.vmem [#allocation2], %s242
        %p244 = pneg %p58
        %p245 = pneg %p55
        %s246 = sand.u32 %s23, 1
        %s247 = scalar_lea.sflag [#allocation6], %s246
        %s248 = sand.u32 %s75, 1
        %s249 = smul.addr %s248, 8
        %s250 = scalar_lea.vmem [#allocation5], %s249
        %p251 = pneg %p88
        %p252 = pneg %p85
        %p253 = pneg %p109
        %p254 = pneg %p106
        %p255 = pneg %p137
        %p256 = pneg %p134
        %s257 = sand.u32 %s124, 1
        %s258 = scalar_lea.sflag [#allocation4], %s257
        %s259 = sand.u32 %s124, 1
        %s260 = smul.addr %s259, 64
        %s261 = scalar_lea.vmem [#allocation8], %s260
        %s262 = sadd.s32 %s28, 1
        %v263 = vld [vmem:[%s221] sm:$0xff]
        %v264 = vld [vmem:[%s230] sm:$0x1]
        %vm267 = vcmask 1046528
        %v268 = vrot.slane %v263, 1
        %v269 = vrot.slane %v264, 1
        %v270 = vsel %vm267, %v268, %v269
        %v272 = vld [vmem:[#allocation7] sm:$0xff]
        %v273 = vld [vmem:[#allocation7 + $0x8] sm:$0xff]
        %v274 = vld [vmem:[#allocation7 + $0x10] sm:$0xff]
        %v275 = vld [vmem:[#allocation7 + $0x18] sm:$0xff]
        %v276 = vld [vmem:[#allocation7 + $0x20] sm:$0xff]
        %v277 = vld [vmem:[#allocation7 + $0x28] sm:$0xff]
        %v278 = vld [vmem:[#allocation7 + $0x30] sm:$0xff]
        %v279 = vld [vmem:[#allocation7 + $0x38] sm:$0xff]
        %v280 = vld [vmem:[#allocation7 + $0x40] sm:$0xff]
        %v281 = vld [vmem:[#allocation7 + $0x48] sm:$0xff]
        %v282 = vld [vmem:[#allocation7 + $0x50] sm:$0xff]
        %v283 = vld [vmem:[#allocation7 + $0x58] sm:$0xff]
        %v284 = vld [vmem:[#allocation7 + $0x60] sm:$0xff]
        %v285 = vld [vmem:[#allocation7 + $0x68] sm:$0xff]
        %v286 = vld [vmem:[#allocation7 + $0x70] sm:$0xff]
        %v287 = vld [vmem:[#allocation7 + $0x78] sm:$0xff]
        %v288 = vld [vmem:[#allocation7 + $0x80] sm:$0xff]
        %v289 = vld [vmem:[#allocation7 + $0x88] sm:$0xff]
        %v290 = vld [vmem:[#allocation7 + $0x90] sm:$0xff]
        %v291 = vld [vmem:[#allocation7 + $0x98] sm:$0xff]
        %v292 = vld [vmem:[#allocation7 + $0xa0] sm:$0xff]
        %v293 = vld [vmem:[#allocation7 + $0xa8] sm:$0xff]
        %v294 = vld [vmem:[#allocation7 + $0xb0] sm:$0xff]
        %v295 = vld [vmem:[#allocation7 + $0xb8] sm:$0xff]
        %v296 = vld [vmem:[#allocation7 + $0xc0] sm:$0xff]
        %v297 = vld [vmem:[#allocation7 + $0xc8] sm:$0xff]
        %v298 = vld [vmem:[#allocation7 + $0xd0] sm:$0xff]
        %v299 = vld [vmem:[#allocation7 + $0xd8] sm:$0xff]
        %v300 = vld [vmem:[#allocation7 + $0xe0] sm:$0xff]
        %v301 = vld [vmem:[#allocation7 + $0xe8] sm:$0xff]
        %v302 = vld [vmem:[#allocation7 + $0xf0] sm:$0xff]
        %v303 = vld [vmem:[#allocation7 + $0xf8] sm:$0xff]
        %v304 = vld [vmem:[#allocation7 + $0x100] sm:$0xff]
        %v305 = vld [vmem:[#allocation7 + $0x108] sm:$0xff]
        %v306 = vld [vmem:[#allocation7 + $0x110] sm:$0xff]
        %v307 = vld [vmem:[#allocation7 + $0x118] sm:$0xff]
        %v308 = vld [vmem:[#allocation7 + $0x120] sm:$0xff]
        %v309 = vld [vmem:[#allocation7 + $0x128] sm:$0xff]
        %v310 = vld [vmem:[#allocation7 + $0x130] sm:$0xff]
        %v311 = vld [vmem:[#allocation7 + $0x138] sm:$0xff]
        %v312 = vld [vmem:[#allocation7 + $0x140] sm:$0xff]
        %v313 = vld [vmem:[#allocation7 + $0x148] sm:$0xff]
        %v314 = vld [vmem:[#allocation7 + $0x150] sm:$0xff]
        %v315 = vld [vmem:[#allocation7 + $0x158] sm:$0xff]
        %v316 = vld [vmem:[#allocation7 + $0x160] sm:$0xff]
        %v317 = vld [vmem:[#allocation7 + $0x168] sm:$0xff]
        %v318 = vld [vmem:[#allocation7 + $0x170] sm:$0xff]
        %v319 = vld [vmem:[#allocation7 + $0x178] sm:$0xff]
        %v320 = vld [vmem:[#allocation7 + $0x180] sm:$0xff]
        %v321 = vld [vmem:[#allocation7 + $0x188] sm:$0xff]
        %v322 = vld [vmem:[#allocation7 + $0x190] sm:$0xff]
        %v323 = vld [vmem:[#allocation7 + $0x198] sm:$0xff]
        %v324 = vld [vmem:[#allocation7 + $0x1a0] sm:$0xff]
        %v325 = vld [vmem:[#allocation7 + $0x1a8] sm:$0xff]
        %v326 = vld [vmem:[#allocation7 + $0x1b0] sm:$0xff]
        %v327 = vld [vmem:[#allocation7 + $0x1b8] sm:$0xff]
        %v328 = vld [vmem:[#allocation7 + $0x1c0] sm:$0xff]
        %v329 = vld [vmem:[#allocation7 + $0x1c8] sm:$0xff]
        %v330 = vld [vmem:[#allocation7 + $0x1d0] sm:$0xff]
        %v331 = vld [vmem:[#allocation7 + $0x1d8] sm:$0xff]
        %v332 = vld [vmem:[#allocation7 + $0x1e0] sm:$0xff]
        %v333 = vld [vmem:[#allocation7 + $0x1e8] sm:$0xff]
        %v334 = vld [vmem:[#allocation7 + $0x1f0] sm:$0xff]
        %v335 = vld [vmem:[#allocation7 + $0x1f8] sm:$0xff]
        %v336 = vld [vmem:[#allocation7 + $0x200] sm:$0xff]
        %v337 = vld [vmem:[#allocation7 + $0x208] sm:$0xff]
        %v338 = vld [vmem:[#allocation7 + $0x210] sm:$0xff]
        %v339 = vld [vmem:[#allocation7 + $0x218] sm:$0xff]
        %v340 = vld [vmem:[#allocation7 + $0x220] sm:$0xff]
        %v341 = vld [vmem:[#allocation7 + $0x228] sm:$0xff]
        %v342 = vld [vmem:[#allocation7 + $0x230] sm:$0xff]
        %v343 = vld [vmem:[#allocation7 + $0x238] sm:$0xff]
        %v344 = vld [vmem:[#allocation7 + $0x240] sm:$0xff]
        %v345 = vld [vmem:[#allocation7 + $0x248] sm:$0xff]
        %v346 = vld [vmem:[#allocation7 + $0x250] sm:$0xff]
        %v347 = vld [vmem:[#allocation7 + $0x258] sm:$0xff]
        %v348 = vld [vmem:[#allocation7 + $0x260] sm:$0xff]
        %v349 = vld [vmem:[#allocation7 + $0x268] sm:$0xff]
        %v350 = vld [vmem:[#allocation7 + $0x270] sm:$0xff]
        %v351 = vld [vmem:[#allocation7 + $0x278] sm:$0xff]
        %v352 = vld [vmem:[#allocation7 + $0x280] sm:$0xff]
        %v353 = vld [vmem:[#allocation7 + $0x288] sm:$0xff]
        %v354 = vld [vmem:[#allocation7 + $0x290] sm:$0xff]
        %v355 = vld [vmem:[#allocation7 + $0x298] sm:$0xff]
        %v356 = vld [vmem:[#allocation7 + $0x2a0] sm:$0xff]
        %v357 = vld [vmem:[#allocation7 + $0x2a8] sm:$0xff]
        %v358 = vld [vmem:[#allocation7 + $0x2b0] sm:$0xff]
        %v359 = vld [vmem:[#allocation7 + $0x2b8] sm:$0xff]
        %v360 = vld [vmem:[#allocation7 + $0x2c0] sm:$0xff]
        %v361 = vld [vmem:[#allocation7 + $0x2c8] sm:$0xff]
        %v362 = vld [vmem:[#allocation7 + $0x2d0] sm:$0xff]
        %v363 = vld [vmem:[#allocation7 + $0x2d8] sm:$0xff]
        %v364 = vld [vmem:[#allocation7 + $0x2e0] sm:$0xff]
        %v365 = vld [vmem:[#allocation7 + $0x2e8] sm:$0xff]
        %v366 = vld [vmem:[#allocation7 + $0x2f0] sm:$0xff]
        %v367 = vld [vmem:[#allocation7 + $0x2f8] sm:$0xff]
        %v368 = vld [vmem:[#allocation7 + $0x300] sm:$0xff]
        %v369 = vld [vmem:[#allocation7 + $0x308] sm:$0xff]
        %v370 = vld [vmem:[#allocation7 + $0x310] sm:$0xff]
        %v371 = vld [vmem:[#allocation7 + $0x318] sm:$0xff]
        %v372 = vld [vmem:[#allocation7 + $0x320] sm:$0xff]
        %v373 = vld [vmem:[#allocation7 + $0x328] sm:$0xff]
        %v374 = vld [vmem:[#allocation7 + $0x330] sm:$0xff]
        %v375 = vld [vmem:[#allocation7 + $0x338] sm:$0xff]
        %v376 = vld [vmem:[#allocation7 + $0x340] sm:$0xff]
        %v377 = vld [vmem:[#allocation7 + $0x348] sm:$0xff]
        %v378 = vld [vmem:[#allocation7 + $0x350] sm:$0xff]
        %v379 = vld [vmem:[#allocation7 + $0x358] sm:$0xff]
        %v380 = vld [vmem:[#allocation7 + $0x360] sm:$0xff]
        %v381 = vld [vmem:[#allocation7 + $0x368] sm:$0xff]
        %v382 = vld [vmem:[#allocation7 + $0x370] sm:$0xff]
        %v383 = vld [vmem:[#allocation7 + $0x378] sm:$0xff]
        %v384 = vld [vmem:[#allocation7 + $0x380] sm:$0xff]
        %v385 = vld [vmem:[#allocation7 + $0x388] sm:$0xff]
        %v386 = vld [vmem:[#allocation7 + $0x390] sm:$0xff]
        %v387 = vld [vmem:[#allocation7 + $0x398] sm:$0xff]
        %v388 = vld [vmem:[#allocation7 + $0x3a0] sm:$0xff]
        %v389 = vld [vmem:[#allocation7 + $0x3a8] sm:$0xff]
        %v390 = vld [vmem:[#allocation7 + $0x3b0] sm:$0xff]
        %v391 = vld [vmem:[#allocation7 + $0x3b8] sm:$0xff]
        %v392 = vld [vmem:[#allocation7 + $0x3c0] sm:$0xff]
        %v393 = vld [vmem:[#allocation7 + $0x3c8] sm:$0xff]
        %v394 = vld [vmem:[#allocation7 + $0x3d0] sm:$0xff]
        %v395 = vld [vmem:[#allocation7 + $0x3d8] sm:$0xff]
        %v396 = vld [vmem:[#allocation7 + $0x3e0] sm:$0xff]
        %v397 = vld [vmem:[#allocation7 + $0x3e8] sm:$0xff]
        %v398 = vld [vmem:[#allocation7 + $0x3f0] sm:$0xff]
        %v399 = vld [vmem:[#allocation7 + $0x3f8] sm:$0xff]
        %v400 = vld [vmem:[#allocation7 + $0x400] sm:$0xff]
        %v401 = vld [vmem:[#allocation7 + $0x408] sm:$0xff]
        %v402 = vld [vmem:[#allocation7 + $0x410] sm:$0xff]
        %v403 = vld [vmem:[#allocation7 + $0x418] sm:$0xff]
        %v404 = vld [vmem:[#allocation7 + $0x420] sm:$0xff]
        %v405 = vld [vmem:[#allocation7 + $0x428] sm:$0xff]
        %v406 = vld [vmem:[#allocation7 + $0x430] sm:$0xff]
        %v407 = vld [vmem:[#allocation7 + $0x438] sm:$0xff]
        %v408 = vld [vmem:[#allocation7 + $0x440] sm:$0xff]
        %v409 = vld [vmem:[#allocation7 + $0x448] sm:$0xff]
        %v410 = vld [vmem:[#allocation7 + $0x450] sm:$0xff]
        %v411 = vld [vmem:[#allocation7 + $0x458] sm:$0xff]
        %v412 = vld [vmem:[#allocation7 + $0x460] sm:$0xff]
        %v413 = vld [vmem:[#allocation7 + $0x468] sm:$0xff]
        %v414 = vld [vmem:[#allocation7 + $0x470] sm:$0xff]
        %v415 = vld [vmem:[#allocation7 + $0x478] sm:$0xff]
        %v416 = vld [vmem:[#allocation7 + $0x480] sm:$0xff]
        %v417 = vld [vmem:[#allocation7 + $0x488] sm:$0xff]
        %v418 = vld [vmem:[#allocation7 + $0x490] sm:$0xff]
        %v419 = vld [vmem:[#allocation7 + $0x498] sm:$0xff]
        %v420 = vld [vmem:[#allocation7 + $0x4a0] sm:$0xff]
        %v421 = vld [vmem:[#allocation7 + $0x4a8] sm:$0xff]
        %v422 = vld [vmem:[#allocation7 + $0x4b0] sm:$0xff]
        %v423 = vld [vmem:[#allocation7 + $0x4b8] sm:$0xff]
        %v424 = vld [vmem:[#allocation7 + $0x4c0] sm:$0xff]
        %v425 = vld [vmem:[#allocation7 + $0x4c8] sm:$0xff]
        %v426 = vld [vmem:[#allocation7 + $0x4d0] sm:$0xff]
        %v427 = vld [vmem:[#allocation7 + $0x4d8] sm:$0xff]
        %v428 = vld [vmem:[#allocation7 + $0x4e0] sm:$0xff]
        %v429 = vld [vmem:[#allocation7 + $0x4e8] sm:$0xff]
        %v430 = vld [vmem:[#allocation7 + $0x4f0] sm:$0xff]
        %v431 = vld [vmem:[#allocation7 + $0x4f8] sm:$0xff]
        %v432 = vld [vmem:[#allocation7 + $0x500] sm:$0xff]
        %v433 = vld [vmem:[#allocation7 + $0x508] sm:$0xff]
        %v434 = vld [vmem:[#allocation7 + $0x510] sm:$0xff]
        %v435 = vld [vmem:[#allocation7 + $0x518] sm:$0xff]
        %v436 = vld [vmem:[#allocation7 + $0x520] sm:$0xff]
        %v437 = vld [vmem:[#allocation7 + $0x528] sm:$0xff]
        %v438 = vld [vmem:[#allocation7 + $0x530] sm:$0xff]
        %v439 = vld [vmem:[#allocation7 + $0x538] sm:$0xff]
        %v440 = vld [vmem:[#allocation7 + $0x540] sm:$0xff]
        %v441 = vld [vmem:[#allocation7 + $0x548] sm:$0xff]
        %v442 = vld [vmem:[#allocation7 + $0x550] sm:$0xff]
        %v443 = vld [vmem:[#allocation7 + $0x558] sm:$0xff]
        %v444 = vld [vmem:[#allocation7 + $0x560] sm:$0xff]
        %v445 = vld [vmem:[#allocation7 + $0x568] sm:$0xff]
        %v446 = vld [vmem:[#allocation7 + $0x570] sm:$0xff]
        %v447 = vld [vmem:[#allocation7 + $0x578] sm:$0xff]
        %v448 = vld [vmem:[#allocation7 + $0x580] sm:$0xff]
        %v449 = vld [vmem:[#allocation7 + $0x588] sm:$0xff]
        %v450 = vld [vmem:[#allocation7 + $0x590] sm:$0xff]
        %v451 = vld [vmem:[#allocation7 + $0x598] sm:$0xff]
        %v452 = vld [vmem:[#allocation7 + $0x5a0] sm:$0xff]
        %v453 = vld [vmem:[#allocation7 + $0x5a8] sm:$0xff]
        %v454 = vld [vmem:[#allocation7 + $0x5b0] sm:$0xff]
        %v455 = vld [vmem:[#allocation7 + $0x5b8] sm:$0xff]
        %v456 = vld [vmem:[#allocation7 + $0x5c0] sm:$0xff]
        %v457 = vld [vmem:[#allocation7 + $0x5c8] sm:$0xff]
        %v458 = vld [vmem:[#allocation7 + $0x5d0] sm:$0xff]
        %v459 = vld [vmem:[#allocation7 + $0x5d8] sm:$0xff]
        %v460 = vld [vmem:[#allocation7 + $0x5e0] sm:$0xff]
        %v461 = vld [vmem:[#allocation7 + $0x5e8] sm:$0xff]
        %v462 = vld [vmem:[#allocation7 + $0x5f0] sm:$0xff]
        %v463 = vld [vmem:[#allocation7 + $0x5f8] sm:$0xff]
        %v464 = vld [vmem:[#allocation7 + $0x600] sm:$0xff]
        %v465 = vld [vmem:[#allocation7 + $0x608] sm:$0xff]
        %v466 = vld [vmem:[#allocation7 + $0x610] sm:$0xff]
        %v467 = vld [vmem:[#allocation7 + $0x618] sm:$0xff]
        %v468 = vld [vmem:[#allocation7 + $0x620] sm:$0xff]
        %v469 = vld [vmem:[#allocation7 + $0x628] sm:$0xff]
        %v470 = vld [vmem:[#allocation7 + $0x630] sm:$0xff]
        %v471 = vld [vmem:[#allocation7 + $0x638] sm:$0xff]
        %v472 = vld [vmem:[#allocation7 + $0x640] sm:$0xff]
        %v473 = vld [vmem:[#allocation7 + $0x648] sm:$0xff]
        %v474 = vld [vmem:[#allocation7 + $0x650] sm:$0xff]
        %v475 = vld [vmem:[#allocation7 + $0x658] sm:$0xff]
        %v476 = vld [vmem:[#allocation7 + $0x660] sm:$0xff]
        %v477 = vld [vmem:[#allocation7 + $0x668] sm:$0xff]
        %v478 = vld [vmem:[#allocation7 + $0x670] sm:$0xff]
        %v479 = vld [vmem:[#allocation7 + $0x678] sm:$0xff]
        %v480 = vld [vmem:[#allocation7 + $0x680] sm:$0xff]
        %v481 = vld [vmem:[#allocation7 + $0x688] sm:$0xff]
        %v482 = vld [vmem:[#allocation7 + $0x690] sm:$0xff]
        %v483 = vld [vmem:[#allocation7 + $0x698] sm:$0xff]
        %v484 = vld [vmem:[#allocation7 + $0x6a0] sm:$0xff]
        %v485 = vld [vmem:[#allocation7 + $0x6a8] sm:$0xff]
        %v486 = vld [vmem:[#allocation7 + $0x6b0] sm:$0xff]
        %v487 = vld [vmem:[#allocation7 + $0x6b8] sm:$0xff]
        %v488 = vld [vmem:[#allocation7 + $0x6c0] sm:$0xff]
        %v489 = vld [vmem:[#allocation7 + $0x6c8] sm:$0xff]
        %v490 = vld [vmem:[#allocation7 + $0x6d0] sm:$0xff]
        %v491 = vld [vmem:[#allocation7 + $0x6d8] sm:$0xff]
        %v492 = vld [vmem:[#allocation7 + $0x6e0] sm:$0xff]
        %v493 = vld [vmem:[#allocation7 + $0x6e8] sm:$0xff]
        %v494 = vld [vmem:[#allocation7 + $0x6f0] sm:$0xff]
        %v495 = vld [vmem:[#allocation7 + $0x6f8] sm:$0xff]
        %v496 = vld [vmem:[#allocation7 + $0x700] sm:$0xff]
        %v497 = vld [vmem:[#allocation7 + $0x708] sm:$0xff]
        %v498 = vld [vmem:[#allocation7 + $0x710] sm:$0xff]
        %v499 = vld [vmem:[#allocation7 + $0x718] sm:$0xff]
        %v500 = vld [vmem:[#allocation7 + $0x720] sm:$0xff]
        %v501 = vld [vmem:[#allocation7 + $0x728] sm:$0xff]
        %v502 = vld [vmem:[#allocation7 + $0x730] sm:$0xff]
        %v503 = vld [vmem:[#allocation7 + $0x738] sm:$0xff]
        %v504 = vld [vmem:[#allocation7 + $0x740] sm:$0xff]
        %v505 = vld [vmem:[#allocation7 + $0x748] sm:$0xff]
        %v506 = vld [vmem:[#allocation7 + $0x750] sm:$0xff]
        %v507 = vld [vmem:[#allocation7 + $0x758] sm:$0xff]
        %v508 = vld [vmem:[#allocation7 + $0x760] sm:$0xff]
        %v509 = vld [vmem:[#allocation7 + $0x768] sm:$0xff]
        %v510 = vld [vmem:[#allocation7 + $0x770] sm:$0xff]
        %v511 = vld [vmem:[#allocation7 + $0x778] sm:$0xff]
        %v512 = vld [vmem:[#allocation7 + $0x780] sm:$0xff]
        %v513 = vld [vmem:[#allocation7 + $0x788] sm:$0xff]
        %v514 = vld [vmem:[#allocation7 + $0x790] sm:$0xff]
        %v515 = vld [vmem:[#allocation7 + $0x798] sm:$0xff]
        %v516 = vld [vmem:[#allocation7 + $0x7a0] sm:$0xff]
        %v517 = vld [vmem:[#allocation7 + $0x7a8] sm:$0xff]
        %v518 = vld [vmem:[#allocation7 + $0x7b0] sm:$0xff]
        %v519 = vld [vmem:[#allocation7 + $0x7b8] sm:$0xff]
        %v520 = vld [vmem:[#allocation7 + $0x7c0] sm:$0xff]
        %v521 = vld [vmem:[#allocation7 + $0x7c8] sm:$0xff]
        %v522 = vld [vmem:[#allocation7 + $0x7d0] sm:$0xff]
        %v523 = vld [vmem:[#allocation7 + $0x7d8] sm:$0xff]
        %v524 = vld [vmem:[#allocation7 + $0x7e0] sm:$0xff]
        %v525 = vld [vmem:[#allocation7 + $0x7e8] sm:$0xff]
        %v526 = vld [vmem:[#allocation7 + $0x7f0] sm:$0xff]
        %v527 = vld [vmem:[#allocation7 + $0x7f8] sm:$0xff]
        %528 = vmatprep.subr.mxu0 %v393
        %529 = vmatpush1.msra.mxu0 %v392
        %530 = vmatprep.subr.mxu0 %v385
        %531 = vmatpush1.msra.mxu0 %v384
        %532 = vmatprep.subr.mxu0 %v377
        %533 = vmatpush1.msra.mxu0 %v376
        %534 = vmatprep.subr.mxu0 %v369
        %535 = vmatpush1.msra.mxu0 %v368
        %536 = vmatprep.subr.mxu0 %v361
        %537 = vmatpush1.msra.mxu0 %v360
        %538 = vmatprep.subr.mxu0 %v353
        %539 = vmatpush1.msra.mxu0 %v352
        %540 = vmatprep.subr.mxu0 %v345
        %541 = vmatpush1.msra.mxu0 %v344
        %542 = vmatprep.subr.mxu0 %v337
        %543 = vmatpush1.msra.mxu0 %v336
        %544 = vmatprep.subr.mxu0 %v329
        %545 = vmatpush1.msra.mxu0 %v328
        %546 = vmatprep.subr.mxu0 %v321
        %547 = vmatpush1.msra.mxu0 %v320
        %548 = vmatprep.subr.mxu0 %v313
        %549 = vmatpush1.msra.mxu0 %v312
        %550 = vmatprep.subr.mxu0 %v305
        %551 = vmatpush1.msra.mxu0 %v304
        %552 = vmatprep.subr.mxu0 %v297
        %553 = vmatpush1.msra.mxu0 %v296
        %554 = vmatprep.subr.mxu0 %v289
        %555 = vmatpush1.msra.mxu0 %v288
        %556 = vmatprep.subr.mxu0 %v281
        %557 = vmatpush1.msra.mxu0 %v280
        %558 = vmatprep.subr.mxu0 %v273
        %559 = vmatpush1.msra.mxu0 %v272
        %560 = vmatprep.subr.mxu0 %v521
        %561 = vmatpush2.msra.mxu0 %v520
        %562 = vmatprep.subr.mxu0 %v513
        %563 = vmatpush2.msra.mxu0 %v512
        %564 = vmatprep.subr.mxu0 %v505
        %565 = vmatpush2.msra.mxu0 %v504
        %566 = vmatprep.subr.mxu0 %v497
        %567 = vmatpush2.msra.mxu0 %v496
        %568 = vmatprep.subr.mxu0 %v489
        %569 = vmatpush2.msra.mxu0 %v488
        %570 = vmatprep.subr.mxu0 %v481
        %571 = vmatpush2.msra.mxu0 %v480
        %572 = vmatprep.subr.mxu0 %v473
        %573 = vmatpush2.msra.mxu0 %v472
        %574 = vmatprep.subr.mxu0 %v465
        %575 = vmatpush2.msra.mxu0 %v464
        %576 = vmatprep.subr.mxu0 %v457
        %577 = vmatpush2.msra.mxu0 %v456
        %578 = vmatprep.subr.mxu0 %v449
        %579 = vmatpush2.msra.mxu0 %v448
        %580 = vmatprep.subr.mxu0 %v441
        %581 = vmatpush2.msra.mxu0 %v440
        %582 = vmatprep.subr.mxu0 %v433
        %583 = vmatpush2.msra.mxu0 %v432
        %584 = vmatprep.subr.mxu0 %v425
        %585 = vmatpush2.msra.mxu0 %v424
        %586 = vmatprep.subr.mxu0 %v417
        %587 = vmatpush2.msra.mxu0 %v416
        %588 = vmatprep.subr.mxu0 %v409
        %589 = vmatpush2.msra.mxu0 %v408
        %590 = vmatprep.subr.mxu0 %v401
        %591 = vmatpush2.msra.mxu0 %v400
        %592 = vmatprep.mubr.f32.mxu0 %v270
        %593 = vmatmul.mubr.f32.gmra.mxu0 %v263
        %v594 = vpop.f32.mrf.mxu0
        %v595 = vadd.f32 0.0, %v594
        %v596 = vpop.f32.mrf.mxu0
        %v597 = vadd.f32 0.0, %v596
        %598 = vdwg.mxu0
        %599 = vmatprep.subr.mxu0 %v395
        %600 = vmatpush1.msra.mxu0 %v394
        %601 = vmatprep.subr.mxu0 %v387
        %602 = vmatpush1.msra.mxu0 %v386
        %603 = vmatprep.subr.mxu0 %v379
        %604 = vmatpush1.msra.mxu0 %v378
        %605 = vmatprep.subr.mxu0 %v371
        %606 = vmatpush1.msra.mxu0 %v370
        %607 = vmatprep.subr.mxu0 %v363
        %608 = vmatpush1.msra.mxu0 %v362
        %609 = vmatprep.subr.mxu0 %v355
        %610 = vmatpush1.msra.mxu0 %v354
        %611 = vmatprep.subr.mxu0 %v347
        %612 = vmatpush1.msra.mxu0 %v346
        %613 = vmatprep.subr.mxu0 %v339
        %614 = vmatpush1.msra.mxu0 %v338
        %615 = vmatprep.subr.mxu0 %v331
        %616 = vmatpush1.msra.mxu0 %v330
        %617 = vmatprep.subr.mxu0 %v323
        %618 = vmatpush1.msra.mxu0 %v322
        %619 = vmatprep.subr.mxu0 %v315
        %620 = vmatpush1.msra.mxu0 %v314
        %621 = vmatprep.subr.mxu0 %v307
        %622 = vmatpush1.msra.mxu0 %v306
        %623 = vmatprep.subr.mxu0 %v299
        %624 = vmatpush1.msra.mxu0 %v298
        %625 = vmatprep.subr.mxu0 %v291
        %626 = vmatpush1.msra.mxu0 %v290
        %627 = vmatprep.subr.mxu0 %v283
        %628 = vmatpush1.msra.mxu0 %v282
        %629 = vmatprep.subr.mxu0 %v275
        %630 = vmatpush1.msra.mxu0 %v274
        %631 = vmatprep.subr.mxu0 %v523
        %632 = vmatpush2.msra.mxu0 %v522
        %633 = vmatprep.subr.mxu0 %v515
        %634 = vmatpush2.msra.mxu0 %v514
        %635 = vmatprep.subr.mxu0 %v507
        %636 = vmatpush2.msra.mxu0 %v506
        %637 = vmatprep.subr.mxu0 %v499
        %638 = vmatpush2.msra.mxu0 %v498
        %639 = vmatprep.subr.mxu0 %v491
        %640 = vmatpush2.msra.mxu0 %v490
        %641 = vmatprep.subr.mxu0 %v483
        %642 = vmatpush2.msra.mxu0 %v482
        %643 = vmatprep.subr.mxu0 %v475
        %644 = vmatpush2.msra.mxu0 %v474
        %645 = vmatprep.subr.mxu0 %v467
        %646 = vmatpush2.msra.mxu0 %v466
        %647 = vmatprep.subr.mxu0 %v459
        %648 = vmatpush2.msra.mxu0 %v458
        %649 = vmatprep.subr.mxu0 %v451
        %650 = vmatpush2.msra.mxu0 %v450
        %651 = vmatprep.subr.mxu0 %v443
        %652 = vmatpush2.msra.mxu0 %v442
        %653 = vmatprep.subr.mxu0 %v435
        %654 = vmatpush2.msra.mxu0 %v434
        %655 = vmatprep.subr.mxu0 %v427
        %656 = vmatpush2.msra.mxu0 %v426
        %657 = vmatprep.subr.mxu0 %v419
        %658 = vmatpush2.msra.mxu0 %v418
        %659 = vmatprep.subr.mxu0 %v411
        %660 = vmatpush2.msra.mxu0 %v410
        %661 = vmatprep.subr.mxu0 %v403
        %662 = vmatpush2.msra.mxu0 %v402
        %663 = vmatprep.mubr.f32.mxu0 %v270
        %664 = vmatmul.mubr.f32.gmra.mxu0 %v263
        %v665 = vpop.f32.mrf.mxu0
        %v666 = vadd.f32 0.0, %v665
        %v667 = vpop.f32.mrf.mxu0
        %v668 = vadd.f32 0.0, %v667
        %669 = vdwg.mxu0
        %670 = vmatprep.subr.mxu0 %v397
        %671 = vmatpush1.msra.mxu0 %v396
        %672 = vmatprep.subr.mxu0 %v389
        %673 = vmatpush1.msra.mxu0 %v388
        %674 = vmatprep.subr.mxu0 %v381
        %675 = vmatpush1.msra.mxu0 %v380
        %676 = vmatprep.subr.mxu0 %v373
        %677 = vmatpush1.msra.mxu0 %v372
        %678 = vmatprep.subr.mxu0 %v365
        %679 = vmatpush1.msra.mxu0 %v364
        %680 = vmatprep.subr.mxu0 %v357
        %681 = vmatpush1.msra.mxu0 %v356
        %682 = vmatprep.subr.mxu0 %v349
        %683 = vmatpush1.msra.mxu0 %v348
        %684 = vmatprep.subr.mxu0 %v341
        %685 = vmatpush1.msra.mxu0 %v340
        %686 = vmatprep.subr.mxu0 %v333
        %687 = vmatpush1.msra.mxu0 %v332
        %688 = vmatprep.subr.mxu0 %v325
        %689 = vmatpush1.msra.mxu0 %v324
        %690 = vmatprep.subr.mxu0 %v317
        %691 = vmatpush1.msra.mxu0 %v316
        %692 = vmatprep.subr.mxu0 %v309
        %693 = vmatpush1.msra.mxu0 %v308
        %694 = vmatprep.subr.mxu0 %v301
        %695 = vmatpush1.msra.mxu0 %v300
        %696 = vmatprep.subr.mxu0 %v293
        %697 = vmatpush1.msra.mxu0 %v292
        %698 = vmatprep.subr.mxu0 %v285
        %699 = vmatpush1.msra.mxu0 %v284
        %700 = vmatprep.subr.mxu0 %v277
        %701 = vmatpush1.msra.mxu0 %v276
        %702 = vmatprep.subr.mxu0 %v525
        %703 = vmatpush2.msra.mxu0 %v524
        %704 = vmatprep.subr.mxu0 %v517
        %705 = vmatpush2.msra.mxu0 %v516
        %706 = vmatprep.subr.mxu0 %v509
        %707 = vmatpush2.msra.mxu0 %v508
        %708 = vmatprep.subr.mxu0 %v501
        %709 = vmatpush2.msra.mxu0 %v500
        %710 = vmatprep.subr.mxu0 %v493
        %711 = vmatpush2.msra.mxu0 %v492
        %712 = vmatprep.subr.mxu0 %v485
        %713 = vmatpush2.msra.mxu0 %v484
        %714 = vmatprep.subr.mxu0 %v477
        %715 = vmatpush2.msra.mxu0 %v476
        %716 = vmatprep.subr.mxu0 %v469
        %717 = vmatpush2.msra.mxu0 %v468
        %718 = vmatprep.subr.mxu0 %v461
        %719 = vmatpush2.msra.mxu0 %v460
        %720 = vmatprep.subr.mxu0 %v453
        %721 = vmatpush2.msra.mxu0 %v452
        %722 = vmatprep.subr.mxu0 %v445
        %723 = vmatpush2.msra.mxu0 %v444
        %724 = vmatprep.subr.mxu0 %v437
        %725 = vmatpush2.msra.mxu0 %v436
        %726 = vmatprep.subr.mxu0 %v429
        %727 = vmatpush2.msra.mxu0 %v428
        %728 = vmatprep.subr.mxu0 %v421
        %729 = vmatpush2.msra.mxu0 %v420
        %730 = vmatprep.subr.mxu0 %v413
        %731 = vmatpush2.msra.mxu0 %v412
        %732 = vmatprep.subr.mxu0 %v405
        %733 = vmatpush2.msra.mxu0 %v404
        %734 = vmatprep.mubr.f32.mxu0 %v270
        %735 = vmatmul.mubr.f32.gmra.mxu0 %v263
        %v736 = vpop.f32.mrf.mxu0
        %v737 = vadd.f32 0.0, %v736
        %v738 = vpop.f32.mrf.mxu0
        %v739 = vadd.f32 0.0, %v738
        %740 = vdwg.mxu0
        %741 = vmatprep.subr.mxu0 %v399
        %742 = vmatpush1.msra.mxu0 %v398
        %743 = vmatprep.subr.mxu0 %v391
        %744 = vmatpush1.msra.mxu0 %v390
        %745 = vmatprep.subr.mxu0 %v383
        %746 = vmatpush1.msra.mxu0 %v382
        %747 = vmatprep.subr.mxu0 %v375
        %748 = vmatpush1.msra.mxu0 %v374
        %749 = vmatprep.subr.mxu0 %v367
        %750 = vmatpush1.msra.mxu0 %v366
        %751 = vmatprep.subr.mxu0 %v359
        %752 = vmatpush1.msra.mxu0 %v358
        %753 = vmatprep.subr.mxu0 %v351
        %754 = vmatpush1.msra.mxu0 %v350
        %755 = vmatprep.subr.mxu0 %v343
        %756 = vmatpush1.msra.mxu0 %v342
        %757 = vmatprep.subr.mxu0 %v335
        %758 = vmatpush1.msra.mxu0 %v334
        %759 = vmatprep.subr.mxu0 %v327
        %760 = vmatpush1.msra.mxu0 %v326
        %761 = vmatprep.subr.mxu0 %v319
        %762 = vmatpush1.msra.mxu0 %v318
        %763 = vmatprep.subr.mxu0 %v311
        %764 = vmatpush1.msra.mxu0 %v310
        %765 = vmatprep.subr.mxu0 %v303
        %766 = vmatpush1.msra.mxu0 %v302
        %767 = vmatprep.subr.mxu0 %v295
        %768 = vmatpush1.msra.mxu0 %v294
        %769 = vmatprep.subr.mxu0 %v287
        %770 = vmatpush1.msra.mxu0 %v286
        %771 = vmatprep.subr.mxu0 %v279
        %772 = vmatpush1.msra.mxu0 %v278
        %773 = vmatprep.subr.mxu0 %v527
        %774 = vmatpush2.msra.mxu0 %v526
        %775 = vmatprep.subr.mxu0 %v519
        %776 = vmatpush2.msra.mxu0 %v518
        %777 = vmatprep.subr.mxu0 %v511
        %778 = vmatpush2.msra.mxu0 %v510
        %779 = vmatprep.subr.mxu0 %v503
        %780 = vmatpush2.msra.mxu0 %v502
        %781 = vmatprep.subr.mxu0 %v495
        %782 = vmatpush2.msra.mxu0 %v494
        %783 = vmatprep.subr.mxu0 %v487
        %784 = vmatpush2.msra.mxu0 %v486
        %785 = vmatprep.subr.mxu0 %v479
        %786 = vmatpush2.msra.mxu0 %v478
        %787 = vmatprep.subr.mxu0 %v471
        %788 = vmatpush2.msra.mxu0 %v470
        %789 = vmatprep.subr.mxu0 %v463
        %790 = vmatpush2.msra.mxu0 %v462
        %791 = vmatprep.subr.mxu0 %v455
        %792 = vmatpush2.msra.mxu0 %v454
        %793 = vmatprep.subr.mxu0 %v447
        %794 = vmatpush2.msra.mxu0 %v446
        %795 = vmatprep.subr.mxu0 %v439
        %796 = vmatpush2.msra.mxu0 %v438
        %797 = vmatprep.subr.mxu0 %v431
        %798 = vmatpush2.msra.mxu0 %v430
        %799 = vmatprep.subr.mxu0 %v423
        %800 = vmatpush2.msra.mxu0 %v422
        %801 = vmatprep.subr.mxu0 %v415
        %802 = vmatpush2.msra.mxu0 %v414
        %803 = vmatprep.subr.mxu0 %v407
        %804 = vmatpush2.msra.mxu0 %v406
        %805 = vmatprep.mubr.f32.mxu0 %v270
        %806 = vmatmul.mubr.f32.gmra.mxu0 %v263
        %v807 = vpop.f32.mrf.mxu0
        %v808 = vadd.f32 0.0, %v807
        %v809 = vpop.f32.mrf.mxu0
        %v810 = vadd.f32 0.0, %v809
        %811 = vdwg.mxu0
        %812 = vst [vmem:[%s261] sm:$0xff] %v595
        %s813 = scalar_lea.vmem %s261, 8 [#allocation8]
        %814 = vst [vmem:[%s813] sm:$0xff] %v597
        %s815 = scalar_lea.vmem %s261, 16 [#allocation8]
        %816 = vst [vmem:[%s815] sm:$0xff] %v666
        %s817 = scalar_lea.vmem %s261, 24 [#allocation8]
        %818 = vst [vmem:[%s817] sm:$0xff] %v668
        %s819 = scalar_lea.vmem %s261, 32 [#allocation8]
        %820 = vst [vmem:[%s819] sm:$0xff] %v737
        %s821 = scalar_lea.vmem %s261, 40 [#allocation8]
        %822 = vst [vmem:[%s821] sm:$0xff] %v739
        %s823 = scalar_lea.vmem %s261, 48 [#allocation8]
        %824 = vst [vmem:[%s823] sm:$0xff] %v808
        %s825 = scalar_lea.vmem %s261, 56 [#allocation8]
        %826 = vst [vmem:[%s825] sm:$0xff] %v810
        %s827 = sand.u32 %s124, 1
        %s828 = scalar_lea.sflag [#allocation4], %s827
        %s829 = sand.u32 %s124, 1
        %s830 = smul.addr %s829, 64
        %s831 = scalar_lea.vmem [#allocation8], %s830
        // Predicated region
        $region45: #{tpu_custom_call.1} parent=31 // pred_check
          %p832 = pneg %p134
        $region46: #{tpu_custom_call.1} parent=31 // pred_check_branch
          %834 = sbr.rel (%p832) target = $region48
        $region47: #{tpu_custom_call.1} parent=31 // pred_region
          %s836 = ssub.s32 1024, 1024
          %837 = vsyncadd %s828, %s836
          %s838 = smul.addr %s27, 8
          %s839 = sadd.s32 %s28, %s838
          %s840 = smul.addr %s839, 128
          %s841 = scalar_lea.hbm %s3, %s840
          %s842 = sshll.u32 %s831, 4
          %s843 = int_to_ptr.vmem [resolvable:$true] %s842
          %848 = dma.vmem_to_hbm [thread:$0]  %s843, 1024, %s841, %s828, 128, 128, 8
        $region48: #{tpu_custom_call.1} parent=31 // pred_fallthru
          _
      $region32: #{tpu_custom_call.1} parent=5 // pred_fallthru
        _
      %p849 = scmp.le.s32.totalorder 2, %s18
      // Predicated region
      $region49: #{tpu_custom_call.1} parent=5 // pred_check
        %p850 = pneg %p849
      $region50: #{tpu_custom_call.1} parent=5 // pred_check_branch
        %852 = sbr.rel (%p850) target = $region52
      $region51: #{tpu_custom_call.1} parent=5 // pred_region
        %s853 = ssub.s32 %s18, 2
        // Predicated region
        $region53: #{tpu_custom_call.1} parent=51 // pred_check
          %p854 = pneg %p140
        $region54: #{tpu_custom_call.1} parent=51 // pred_check_branch
          %856 = sbr.rel (%p854) target = $region56
        $region55: #{tpu_custom_call.1} parent=51 // pred_region
          %s857 = sand.u32 %s125, 1
          %s858 = scalar_lea.sflag [#allocation4], %s857
          %s859 = sand.u32 %s125, 1
          %s860 = smul.addr %s859, 64
          %s861 = scalar_lea.vmem [#allocation8], %s860
          %862 = dma.done %s858, 1024
        $region56: #{tpu_custom_call.1} parent=51 // pred_fallthru
          _
      $region52: #{tpu_custom_call.1} parent=5 // pred_fallthru
        _
    $region6: #{tpu_custom_call.1} parent=1 // loop_footer
      %s22 = sadd.s32 1, %s18
    $region7: #{tpu_custom_call.1} parent=1 // loop_footer_branch
      %17 = sbr.rel target = $region3
    $region8: #{tpu_custom_call.1} parent=1 // loop_exit
      _
    %863 = vsyncpa [#allocation3], 1
    %s864 = scalar_lea.sflag [#allocation3], 1
    %865 = vsyncpa %s864, 1
    %866 = vsyncpa [#allocation6], 1
    %s867 = scalar_lea.sflag [#allocation6], 1
    %868 = vsyncpa %s867, 1
    %869 = vsyncpa [#allocation4], 1
    %s870 = scalar_lea.sflag [#allocation4], 1
    %871 = vsyncpa %s870, 1

</llo_original>
